<compile_context>
chip_gen: v7x
topology: tpu7x:2x2x1
jax: 0.10.0
libtpu: 0.0.40
codegen_flags: <defaults>
</compile_context>

<pallas_src>
import functools

import jax
import jax.numpy as jnp
from jax import lax
from jax.experimental import pallas as pl
from jax.experimental.pallas import tpu as pltpu


# SMEM scalar layout.
_DATA_NORM, _DX, _DY, _DZ, _EPS_IN, _EPS_OUT = range(6)


def _lapl_interface_sse_kernel(scalars_ref, mask_ref, pred_ref, data_ref, sse_ref):
    """Masked SSE of (interface Laplacian of pred/data_norm - data) for one sample.

    pred_ref / data_ref : (D, H, W) channel-0 slab of the current batch sample.
    mask_ref            : (D, H, W) float {0,1} interface mask (batch invariant).
    sse_ref             : (1, 1, 128) output block; scalar SSE broadcast on lanes.
    """
    data_norm = scalars_ref[_DATA_NORM]
    dx = scalars_ref[_DX]
    dy = scalars_ref[_DY]
    dz = scalars_ref[_DZ]
    eps_in = scalars_ref[_EPS_IN]
    eps_out = scalars_ref[_EPS_OUT]

    m = mask_ref[...]                       # (D, H, W) in {0., 1.}
    f = pred_ref[...] / data_norm           # field = output / data_norm
    d0 = data_ref[...]                      # target, channel 0

    D, H, W = f.shape

    # epsilon[mask] = eps_in ; epsilon[~mask] = eps_out   (m is exactly 0/1)
    eps = m * eps_in + (1.0 - m) * eps_out

    def hmean(a, b):
        return 2.0 * a * b / (a + b)

    # Face-centered fluxes — pure elementwise VPU work inside the VMEM block.
    fx = hmean(eps[:, :, :-1], eps[:, :, 1:]) * (f[:, :, 1:] - f[:, :, :-1]) / dx
    fy = hmean(eps[:, :-1, :], eps[:, 1:, :]) * (f[:, 1:, :] - f[:, :-1, :]) / dy
    fz = hmean(eps[:-1, :, :], eps[1:, :, :]) * (f[1:, :, :] - f[:-1, :, :]) / dz

    # Divergence on the interior; the reference Laplacian is exactly 0 on the boundary.
    div = ((fx[1:-1, 1:-1, 1:] - fx[1:-1, 1:-1, :-1]) / dx
           + (fy[1:-1, 1:, 1:-1] - fy[1:-1, :-1, 1:-1]) / dy
           + (fz[1:, 1:-1, 1:-1] - fz[:-1, 1:-1, 1:-1]) / dz)      # (D-2, H-2, W-2)

    # ---- masked sum of squared errors for this sample ----
    # Interior points: mask * (div - data)^2
    m_in = m[1:-1, 1:-1, 1:-1]
    d_in = d0[1:-1, 1:-1, 1:-1]
    err = div - d_in
    sse = jnp.sum(m_in * err * err)

    # Boundary points (Laplacian == 0): mask * data^2
    md2 = m * d0 * d0
    hi = lax.broadcasted_iota(jnp.int32, (H, W), 0)
    wi = lax.broadcasted_iota(jnp.int32, (H, W), 1)
    boundary_hw = 1.0 - ((hi > 0) & (hi < H - 1) & (wi > 0) & (wi < W - 1)
                         ).astype(jnp.float32)                     # (H, W)
    sse += jnp.sum(md2[0]) + jnp.sum(md2[D - 1])                   # first/last depth planes
    sse += jnp.sum(md2[1:-1] * boundary_hw[None, :, :])            # H/W boundary shell

    sse_ref[...] = jnp.broadcast_to(sse, (1, 1, 128)).astype(jnp.float32)


def laplacian_loss_interface(output, data, interface_mask, *, dx, dy, dz,
                             epsilon_inside, epsilon_outside, weight,
                             data_norm=1.0):
    """Pallas equivalent of LaplacianLossInterface.forward.

    output : (N, C, D, H, W) network output (only channel 0 reaches the loss).
    data   : (N, Cd, D, H, W) target (only channel 0 is used).
    interface_mask : (D, H, W) bool — selects epsilon_inside and the loss region.
    Returns mse(lapl_interface(output/data_norm)[:, 0][mask], data[:, 0][mask]) * weight
    """
    N, C, D, H, W = output.shape
    assert data.shape[0] == N and data.shape[2:] == (D, H, W)
    assert interface_mask.shape == (D, H, W)

    if output.dtype != jnp.float32:
        output = output.astype(jnp.float32)
    if data.dtype != jnp.float32:
        data = data.astype(jnp.float32)
    mask_f = interface_mask.astype(jnp.float32)

    scalars = jnp.array(
        [data_norm, dx, dy, dz, epsilon_inside, epsilon_outside], jnp.float32)

    # Mem-bound: one read of channel 0 of output/data plus the (resident) mask.
    bytes_accessed = 4 * (2 * N * D * H * W + D * H * W + N * 128)
    flops = 40 * N * D * H * W

    # TODO(synk): for volumes too large for VMEM (D*H*W*4B beyond a few MiB/block),
    # tile the depth axis with 1-plane halos via manual DMA instead of one
    # whole-volume block per sample.
    partial_sse = pl.pallas_call(
        _lapl_interface_sse_kernel,
        out_shape=jax.ShapeDtypeStruct((N, 1, 128), jnp.float32),
        grid_spec=pltpu.PrefetchScalarGridSpec(
            num_scalar_prefetch=0,
            grid=(N,),
            in_specs=[
                pl.BlockSpec(memory_space=pltpu.SMEM),                  # scalars
                pl.BlockSpec((D, H, W), lambda n: (0, 0, 0)),           # mask (resident)
                # Channel 0 is sliced straight out of HBM by the BlockSpec
                # (squeezed N and C dims) — no XLA-side channel-slab copy.
                pl.BlockSpec((None, None, D, H, W),
                             lambda n: (n, 0, 0, 0, 0)),                # output[:, 0]
                pl.BlockSpec((None, None, D, H, W),
                             lambda n: (n, 0, 0, 0, 0)),                # data[:, 0]
            ],
            out_specs=pl.BlockSpec((1, 1, 128), lambda n: (n, 0, 0)),   # per-sample SSE
        ),
        compiler_params=pltpu.CompilerParams(
            # Each step writes its own output block -> batch axis is truly
            # parallel (v7x megacore can shard it; harmless on v5e/v6e).
            dimension_semantics=("parallel",),
            vmem_limit_bytes=32 * 1024 * 1024,
        ),
        cost_estimate=pl.CostEstimate(
            flops=flops, transcendentals=0, bytes_accessed=bytes_accessed),
    )(scalars, mask_f, output, data)

    # Tiny scalar epilogue: mean over the N * n_masked selected points, * weight.
    n_masked = jnp.sum(mask_f)
    sse_total = jnp.sum(partial_sse[:, 0, 0])
    return sse_total / (jnp.float32(N) * n_masked) * jnp.float32(weight)


def _reference_loss(output, data, interface_mask, dx, dy, dz,
                    eps_in, eps_out, data_norm, weight):
    """Pure-JAX mirror of the PyTorch module (mask-weighted form of F.mse_loss)."""
    field = (output / data_norm)[:, 0]                   # only channel 0 reaches the loss
    N, D, H, W = field.shape
    eps = jnp.where(interface_mask, eps_in, eps_out).astype(field.dtype)
    eps = jnp.broadcast_to(eps[None], (N, D, H, W))

    def hm(a, b):
        return 2 * a * b / (a + b)

    fx = hm(eps[:, :, :, :-1], eps[:, :, :, 1:]) * (field[:, :, :, 1:] - field[:, :, :, :-1]) / dx
    fy = hm(eps[:, :, :-1, :], eps[:, :, 1:, :]) * (field[:, :, 1:, :] - field[:, :, :-1, :]) / dy
    fz = hm(eps[:, :-1], eps[:, 1:]) * (field[:, 1:] - field[:, :-1]) / dz

    interior = ((fx[:, 1:-1, 1:-1, 1:] - fx[:, 1:-1, 1:-1, :-1]) / dx
                + (fy[:, 1:-1, 1:, 1:-1] - fy[:, 1:-1, :-1, 1:-1]) / dy
                + (fz[:, 1:, 1:-1, 1:-1] - fz[:, :-1, 1:-1, 1:-1]) / dz)
    lap = jnp.zeros_like(field).at[:, 1:-1, 1:-1, 1:-1].set(interior)

    m = interface_mask.astype(field.dtype)
    err2 = (lap - data[:, 0]) ** 2 * m[None]
    return jnp.sum(err2) / (N * jnp.sum(m)) * weight


if __name__ == "__main__":
    # cfg mirrors LaplacianLossInterface.__init__
    cfg = {"globals": {
        "xmin": 0.0, "xmax": 12.8, "nnx": 128,
        "ymin": 0.0, "ymax": 1.6,  "nny": 16,
        "zmin": 0.0, "zmax": 0.8,  "nnz": 8,
        "epsilon_inside": 2.0, "epsilon_outside": 1.0,
    }}
    lapl_weight = 0.5
    data_norm = 1.3

    g = cfg["globals"]
    dx = (g["xmax"] - g["xmin"]) / g["nnx"]
    dy = (g["ymax"] - g["ymin"]) / g["nny"]
    dz = (g["zmax"] - g["zmin"]) / g["nnz"]

    # Small shapes with a lane-dense last dim: N=2, C=4, (D, H, W) = (8, 16, 128).
    N, C, D, H, W = 2, 4, 8, 16, 128

    key = jax.random.PRNGKey(0)
    k1, k2 = jax.random.split(key)
    output = jax.random.normal(k1, (N, C, D, H, W), dtype=jnp.float32)
    data = jax.random.normal(k2, (N, 1, D, H, W), dtype=jnp.float32)

    # Deterministic interface mask: a box touching the d=0 and w=W-1 boundaries,
    # so both the boundary (Laplacian==0) and interior loss terms are exercised.
    di = jnp.arange(D)[:, None, None]
    hi = jnp.arange(H)[None, :, None]
    wi = jnp.arange(W)[None, None, :]
    interface_mask = (di < 6) & (hi >= 4) & (hi < 12) & (wi >= 32)

    loss_fn = jax.jit(functools.partial(
        laplacian_loss_interface,
        dx=dx, dy=dy, dz=dz,
        epsilon_inside=g["epsilon_inside"], epsilon_outside=g["epsilon_outside"],
        weight=lapl_weight, data_norm=data_norm))

    loss = jax.block_until_ready(loss_fn(output, data, interface_mask))

    ref = _reference_loss(output, data, interface_mask, dx, dy, dz,
                          g["epsilon_inside"], g["epsilon_outside"],
                          data_norm, lapl_weight)
    ref = jax.block_until_ready(ref)

    assert jnp.allclose(loss, ref, rtol=1e-4, atol=1e-5), (loss, ref)
    print("KERNEL_OK")
</pallas_src>

<mosaic_0001>
module attributes {stable_mosaic.version = 11 : i64} {
  func.func @_lapl_interface_sse_kernel(%arg0: i32, %arg1: memref<6xf32, #tpu.memory_space<smem>>, %arg2: memref<8x16x128xf32, #tpu.memory_space<vmem>>, %arg3: memref<1x1x8x16x128xf32, #tpu.memory_space<vmem>>, %arg4: memref<1x1x8x16x128xf32, #tpu.memory_space<vmem>>, %arg5: memref<1x1x128xf32, #tpu.memory_space<vmem>>) attributes {dimension_semantics = [#tpu.dimension_semantics<parallel>], iteration_bounds = array<i64: 2>, scalar_prefetch = 0 : i64, scratch_operands = 0 : i64, tpu.core_type = #tpu.core_type<tc>, window_params = [{transform_indices = @transform_0, window_bounds = array<i64: 6>}, {pipeline_mode = #tpu.pipeline_mode<synchronous>, transform_indices = @transform_1, window_bounds = array<i64: 8, 16, 128>}, {transform_indices = @transform_2, window_bounds = array<i64: 1, 1, 8, 16, 128>}, {transform_indices = @transform_3, window_bounds = array<i64: 1, 1, 8, 16, 128>}, {transform_indices = @transform_4, window_bounds = array<i64: 1, 1, 128>}]} {
    %c0 = arith.constant 0 : index
    %0 = memref.load %arg1[%c0] : memref<6xf32, #tpu.memory_space<smem>>
    %c1 = arith.constant 1 : index
    %1 = memref.load %arg1[%c1] : memref<6xf32, #tpu.memory_space<smem>>
    %c2 = arith.constant 2 : index
    %2 = memref.load %arg1[%c2] : memref<6xf32, #tpu.memory_space<smem>>
    %c3 = arith.constant 3 : index
    %3 = memref.load %arg1[%c3] : memref<6xf32, #tpu.memory_space<smem>>
    %c4 = arith.constant 4 : index
    %4 = memref.load %arg1[%c4] : memref<6xf32, #tpu.memory_space<smem>>
    %c5 = arith.constant 5 : index
    %5 = memref.load %arg1[%c5] : memref<6xf32, #tpu.memory_space<smem>>
    %c0_0 = arith.constant 0 : index
    %c0_1 = arith.constant 0 : index
    %c0_2 = arith.constant 0 : index
    %6 = vector.load %arg2[%c0_0, %c0_1, %c0_2] : memref<8x16x128xf32, #tpu.memory_space<vmem>>, vector<8x16x128xf32>
    %c0_3 = arith.constant 0 : index
    %c0_4 = arith.constant 0 : index
    %c0_5 = arith.constant 0 : index
    %c0_6 = arith.constant 0 : index
    %c0_7 = arith.constant 0 : index
    %7 = vector.load %arg3[%c0_3, %c0_4, %c0_5, %c0_6, %c0_7] : memref<1x1x8x16x128xf32, #tpu.memory_space<vmem>>, vector<1x1x8x16x128xf32>
    %8 = vector.shape_cast %7 : vector<1x1x8x16x128xf32> to vector<8x16x128xf32>
    %9 = vector.broadcast %0 : f32 to vector<8x16x128xf32>
    %10 = arith.divf %8, %9 : vector<8x16x128xf32>
    %c0_8 = arith.constant 0 : index
    %c0_9 = arith.constant 0 : index
    %c0_10 = arith.constant 0 : index
    %c0_11 = arith.constant 0 : index
    %c0_12 = arith.constant 0 : index
    %11 = vector.load %arg4[%c0_8, %c0_9, %c0_10, %c0_11, %c0_12] : memref<1x1x8x16x128xf32, #tpu.memory_space<vmem>>, vector<1x1x8x16x128xf32>
    %12 = vector.shape_cast %11 : vector<1x1x8x16x128xf32> to vector<8x16x128xf32>
    %13 = vector.broadcast %4 : f32 to vector<8x16x128xf32>
    %14 = arith.mulf %6, %13 : vector<8x16x128xf32>
    %cst = arith.constant 1.000000e+00 : f32
    %15 = vector.broadcast %cst : f32 to vector<8x16x128xf32>
    %16 = arith.subf %15, %6 : vector<8x16x128xf32>
    %17 = vector.broadcast %5 : f32 to vector<8x16x128xf32>
    %18 = arith.mulf %16, %17 : vector<8x16x128xf32>
    %19 = arith.addf %14, %18 : vector<8x16x128xf32>
    %20 = vector.extract_strided_slice %19 {offsets = [0, 0, 0], sizes = [8, 16, 127], strides = [1, 1, 1]} : vector<8x16x128xf32> to vector<8x16x127xf32>
    %21 = vector.extract_strided_slice %19 {offsets = [0, 0, 1], sizes = [8, 16, 127], strides = [1, 1, 1]} : vector<8x16x128xf32> to vector<8x16x127xf32>
    %cst_13 = arith.constant 2.000000e+00 : f32
    %22 = vector.broadcast %cst_13 : f32 to vector<8x16x127xf32>
    %23 = arith.mulf %22, %20 : vector<8x16x127xf32>
    %24 = arith.mulf %23, %21 : vector<8x16x127xf32>
    %25 = arith.addf %20, %21 : vector<8x16x127xf32>
    %26 = arith.divf %24, %25 : vector<8x16x127xf32>
    %27 = vector.extract_strided_slice %10 {offsets = [0, 0, 1], sizes = [8, 16, 127], strides = [1, 1, 1]} : vector<8x16x128xf32> to vector<8x16x127xf32>
    %28 = vector.extract_strided_slice %10 {offsets = [0, 0, 0], sizes = [8, 16, 127], strides = [1, 1, 1]} : vector<8x16x128xf32> to vector<8x16x127xf32>
    %29 = arith.subf %27, %28 : vector<8x16x127xf32>
    %30 = arith.mulf %26, %29 : vector<8x16x127xf32>
    %31 = vector.broadcast %1 : f32 to vector<8x16x127xf32>
    %32 = arith.divf %30, %31 : vector<8x16x127xf32>
    %33 = vector.extract_strided_slice %19 {offsets = [0, 0, 0], sizes = [8, 15, 128], strides = [1, 1, 1]} : vector<8x16x128xf32> to vector<8x15x128xf32>
    %34 = vector.extract_strided_slice %19 {offsets = [0, 1, 0], sizes = [8, 15, 128], strides = [1, 1, 1]} : vector<8x16x128xf32> to vector<8x15x128xf32>
    %cst_14 = arith.constant 2.000000e+00 : f32
    %35 = vector.broadcast %cst_14 : f32 to vector<8x15x128xf32>
    %36 = arith.mulf %35, %33 : vector<8x15x128xf32>
    %37 = arith.mulf %36, %34 : vector<8x15x128xf32>
    %38 = arith.addf %33, %34 : vector<8x15x128xf32>
    %39 = arith.divf %37, %38 : vector<8x15x128xf32>
    %40 = vector.extract_strided_slice %10 {offsets = [0, 1, 0], sizes = [8, 15, 128], strides = [1, 1, 1]} : vector<8x16x128xf32> to vector<8x15x128xf32>
    %41 = vector.extract_strided_slice %10 {offsets = [0, 0, 0], sizes = [8, 15, 128], strides = [1, 1, 1]} : vector<8x16x128xf32> to vector<8x15x128xf32>
    %42 = arith.subf %40, %41 : vector<8x15x128xf32>
    %43 = arith.mulf %39, %42 : vector<8x15x128xf32>
    %44 = vector.broadcast %2 : f32 to vector<8x15x128xf32>
    %45 = arith.divf %43, %44 : vector<8x15x128xf32>
    %46 = vector.extract_strided_slice %19 {offsets = [0, 0, 0], sizes = [7, 16, 128], strides = [1, 1, 1]} : vector<8x16x128xf32> to vector<7x16x128xf32>
    %47 = vector.extract_strided_slice %19 {offsets = [1, 0, 0], sizes = [7, 16, 128], strides = [1, 1, 1]} : vector<8x16x128xf32> to vector<7x16x128xf32>
    %cst_15 = arith.constant 2.000000e+00 : f32
    %48 = vector.broadcast %cst_15 : f32 to vector<7x16x128xf32>
    %49 = arith.mulf %48, %46 : vector<7x16x128xf32>
    %50 = arith.mulf %49, %47 : vector<7x16x128xf32>
    %51 = arith.addf %46, %47 : vector<7x16x128xf32>
    %52 = arith.divf %50, %51 : vector<7x16x128xf32>
    %53 = vector.extract_strided_slice %10 {offsets = [1, 0, 0], sizes = [7, 16, 128], strides = [1, 1, 1]} : vector<8x16x128xf32> to vector<7x16x128xf32>
    %54 = vector.extract_strided_slice %10 {offsets = [0, 0, 0], sizes = [7, 16, 128], strides = [1, 1, 1]} : vector<8x16x128xf32> to vector<7x16x128xf32>
    %55 = arith.subf %53, %54 : vector<7x16x128xf32>
    %56 = arith.mulf %52, %55 : vector<7x16x128xf32>
    %57 = vector.broadcast %3 : f32 to vector<7x16x128xf32>
    %58 = arith.divf %56, %57 : vector<7x16x128xf32>
    %59 = vector.extract_strided_slice %32 {offsets = [1, 1, 1], sizes = [6, 14, 126], strides = [1, 1, 1]} : vector<8x16x127xf32> to vector<6x14x126xf32>
    %60 = vector.extract_strided_slice %32 {offsets = [1, 1, 0], sizes = [6, 14, 126], strides = [1, 1, 1]} : vector<8x16x127xf32> to vector<6x14x126xf32>
    %61 = arith.subf %59, %60 : vector<6x14x126xf32>
    %62 = vector.broadcast %1 : f32 to vector<6x14x126xf32>
    %63 = arith.divf %61, %62 : vector<6x14x126xf32>
    %64 = vector.extract_strided_slice %45 {offsets = [1, 1, 1], sizes = [6, 14, 126], strides = [1, 1, 1]} : vector<8x15x128xf32> to vector<6x14x126xf32>
    %65 = vector.extract_strided_slice %45 {offsets = [1, 0, 1], sizes = [6, 14, 126], strides = [1, 1, 1]} : vector<8x15x128xf32> to vector<6x14x126xf32>
    %66 = arith.subf %64, %65 : vector<6x14x126xf32>
    %67 = vector.broadcast %2 : f32 to vector<6x14x126xf32>
    %68 = arith.divf %66, %67 : vector<6x14x126xf32>
    %69 = arith.addf %63, %68 : vector<6x14x126xf32>
    %70 = vector.extract_strided_slice %58 {offsets = [1, 1, 1], sizes = [6, 14, 126], strides = [1, 1, 1]} : vector<7x16x128xf32> to vector<6x14x126xf32>
    %71 = vector.extract_strided_slice %58 {offsets = [0, 1, 1], sizes = [6, 14, 126], strides = [1, 1, 1]} : vector<7x16x128xf32> to vector<6x14x126xf32>
    %72 = arith.subf %70, %71 : vector<6x14x126xf32>
    %73 = vector.broadcast %3 : f32 to vector<6x14x126xf32>
    %74 = arith.divf %72, %73 : vector<6x14x126xf32>
    %75 = arith.addf %69, %74 : vector<6x14x126xf32>
    %76 = vector.extract_strided_slice %6 {offsets = [1, 1, 1], sizes = [6, 14, 126], strides = [1, 1, 1]} : vector<8x16x128xf32> to vector<6x14x126xf32>
    %77 = vector.extract_strided_slice %12 {offsets = [1, 1, 1], sizes = [6, 14, 126], strides = [1, 1, 1]} : vector<8x16x128xf32> to vector<6x14x126xf32>
    %78 = arith.subf %75, %77 : vector<6x14x126xf32>
    %79 = arith.mulf %76, %78 : vector<6x14x126xf32>
    %80 = arith.mulf %79, %78 : vector<6x14x126xf32>
    %81 = vector.shape_cast %80 : vector<6x14x126xf32> to vector<1x6x14x126xf32>
    %cst_16 = arith.constant dense<0.000000e+00> : vector<1xf32>
    %82 = vector.multi_reduction <add>, %81, %cst_16 [1, 2, 3] : vector<1x6x14x126xf32> to vector<1xf32>
    %83 = vector.shape_cast %82 : vector<1xf32> to vector<1x1x1x1xf32>
    %84 = vector.extract %83[0, 0, 0, 0] : f32 from vector<1x1x1x1xf32>
    %85 = arith.mulf %6, %12 : vector<8x16x128xf32>
    %86 = arith.mulf %85, %12 : vector<8x16x128xf32>
    %87 = tpu.iota {dimensions = array<i32: 0>} : vector<16x128xi32>
    %88 = tpu.iota {dimensions = array<i32: 1>} : vector<16x128xi32>
    %c0_i32 = arith.constant 0 : i32
    %89 = vector.broadcast %c0_i32 : i32 to vector<16x128xi32>
    %90 = arith.cmpi sgt, %87, %89 : vector<16x128xi32>
    %c15_i32 = arith.constant 15 : i32
    %91 = vector.broadcast %c15_i32 : i32 to vector<16x128xi32>
    %92 = arith.cmpi slt, %87, %91 : vector<16x128xi32>
    %93 = arith.andi %90, %92 : vector<16x128xi1>
    %c0_i32_17 = arith.constant 0 : i32
    %94 = vector.broadcast %c0_i32_17 : i32 to vector<16x128xi32>
    %95 = arith.cmpi sgt, %88, %94 : vector<16x128xi32>
    %96 = arith.andi %93, %95 : vector<16x128xi1>
    %c127_i32 = arith.constant 127 : i32
    %97 = vector.broadcast %c127_i32 : i32 to vector<16x128xi32>
    %98 = arith.cmpi slt, %88, %97 : vector<16x128xi32>
    %99 = arith.andi %96, %98 : vector<16x128xi1>
    %100 = arith.extui %99 : vector<16x128xi1> to vector<16x128xi32>
    %101 = arith.sitofp %100 : vector<16x128xi32> to vector<16x128xf32>
    %cst_18 = arith.constant 1.000000e+00 : f32
    %102 = vector.broadcast %cst_18 : f32 to vector<16x128xf32>
    %103 = arith.subf %102, %101 : vector<16x128xf32>
    %104 = vector.extract_strided_slice %86 {offsets = [0, 0, 0], sizes = [1, 16, 128], strides = [1, 1, 1]} : vector<8x16x128xf32> to vector<1x16x128xf32>
    %105 = vector.shape_cast %104 : vector<1x16x128xf32> to vector<16x128xf32>
    %106 = vector.shape_cast %105 : vector<16x128xf32> to vector<1x16x128xf32>
    %cst_19 = arith.constant dense<0.000000e+00> : vector<1xf32>
    %107 = vector.multi_reduction <add>, %106, %cst_19 [1, 2] : vector<1x16x128xf32> to vector<1xf32>
    %108 = vector.shape_cast %107 : vector<1xf32> to vector<1x1x1xf32>
    %109 = vector.extract %108[0, 0, 0] : f32 from vector<1x1x1xf32>
    %110 = vector.extract_strided_slice %86 {offsets = [7, 0, 0], sizes = [1, 16, 128], strides = [1, 1, 1]} : vector<8x16x128xf32> to vector<1x16x128xf32>
    %111 = vector.shape_cast %110 : vector<1x16x128xf32> to vector<16x128xf32>
    %112 = vector.shape_cast %111 : vector<16x128xf32> to vector<1x16x128xf32>
    %cst_20 = arith.constant dense<0.000000e+00> : vector<1xf32>
    %113 = vector.multi_reduction <add>, %112, %cst_20 [1, 2] : vector<1x16x128xf32> to vector<1xf32>
    %114 = vector.shape_cast %113 : vector<1xf32> to vector<1x1x1xf32>
    %115 = vector.extract %114[0, 0, 0] : f32 from vector<1x1x1xf32>
    %116 = arith.addf %109, %115 : f32
    %117 = arith.addf %84, %116 : f32
    %118 = vector.extract_strided_slice %86 {offsets = [1, 0, 0], sizes = [6, 16, 128], strides = [1, 1, 1]} : vector<8x16x128xf32> to vector<6x16x128xf32>
    %119 = vector.shape_cast %103 : vector<16x128xf32> to vector<1x16x128xf32>
    %120 = vector.broadcast %119 : vector<1x16x128xf32> to vector<6x16x128xf32>
    %121 = arith.mulf %118, %120 : vector<6x16x128xf32>
    %122 = vector.shape_cast %121 : vector<6x16x128xf32> to vector<1x6x16x128xf32>
    %cst_21 = arith.constant dense<0.000000e+00> : vector<1xf32>
    %123 = vector.multi_reduction <add>, %122, %cst_21 [1, 2, 3] : vector<1x6x16x128xf32> to vector<1xf32>
    %124 = vector.shape_cast %123 : vector<1xf32> to vector<1x1x1x1xf32>
    %125 = vector.extract %124[0, 0, 0, 0] : f32 from vector<1x1x1x1xf32>
    %126 = arith.addf %117, %125 : f32
    %127 = vector.broadcast %126 : f32 to vector<1x1x128xf32>
    %c0_22 = arith.constant 0 : index
    %c0_23 = arith.constant 0 : index
    %c0_24 = arith.constant 0 : index
    %128 = vector.load %arg5[%c0_22, %c0_23, %c0_24] : memref<1x1x128xf32, #tpu.memory_space<vmem>>, vector<1x1x128xf32>
    tpu.vector_store %arg5[%c0_22, %c0_23, %c0_24], %127 {strides = array<i32>} : memref<1x1x128xf32, #tpu.memory_space<vmem>>, vector<1x1x128xf32>,
    return
  }
  func.func @transform_0(%arg0: i32) -> i32 {
    %c0_i32 = arith.constant 0 : i32
    %c0_i32_0 = arith.constant 0 : i32
    return %c0_i32 : i32
  }
  func.func @transform_1(%arg0: i32) -> (i32, i32, i32) {
    %c0_i32 = arith.constant 0 : i32
    %c0_i32_0 = arith.constant 0 : i32
    %c0_i32_1 = arith.constant 0 : i32
    %c0_i32_2 = arith.constant 0 : i32
    return %c0_i32, %c0_i32_0, %c0_i32_1 : i32, i32, i32
  }
  func.func @transform_2(%arg0: i32) -> (i32, i32, i32, i32, i32) {
    %c0_i32 = arith.constant 0 : i32
    %c0_i32_0 = arith.constant 0 : i32
    %c0_i32_1 = arith.constant 0 : i32
    %c0_i32_2 = arith.constant 0 : i32
    %c0_i32_3 = arith.constant 0 : i32
    return %arg0, %c0_i32, %c0_i32_0, %c0_i32_1, %c0_i32_2 : i32, i32, i32, i32, i32
  }
  func.func @transform_3(%arg0: i32) -> (i32, i32, i32, i32, i32) {
    %c0_i32 = arith.constant 0 : i32
    %c0_i32_0 = arith.constant 0 : i32
    %c0_i32_1 = arith.constant 0 : i32
    %c0_i32_2 = arith.constant 0 : i32
    %c0_i32_3 = arith.constant 0 : i32
    return %arg0, %c0_i32, %c0_i32_0, %c0_i32_1, %c0_i32_2 : i32, i32, i32, i32, i32
  }
  func.func @transform_4(%arg0: i32) -> (i32, i32, i32) {
    %c0_i32 = arith.constant 0 : i32
    %c0_i32_0 = arith.constant 0 : i32
    %c0_i32_1 = arith.constant 0 : i32
    return %arg0, %c0_i32, %c0_i32_0 : i32, i32, i32
  }
}

</mosaic_0001>

<llo_original>
// kernel: laplacian_loss_interface.1
$region0: #{laplacian_loss_interface.1}
  #allocation0 [shape = 'u32[]', space=smem, size = 0x4, offset = 0x4, fixed_abs, tag = 'smem constant byte address 0x4 - core index']
  #allocation1 [shape = 'u32[144,128]{1,0:T(1,128)}', space=vmem, size = 0x12000, scoped, tag = 'internal scratch']
  %s0 = inlined_call_operand.vmem [shape: f32[6], index: 0, kind: input, shape index: {}]
  %s1 = inlined_call_operand.vmem [shape: f32[8,16,128], index: 1, kind: input, shape index: {}]
  %s2 = inlined_call_operand.hbm [shape: f32[2,4,8,16,128], index: 2, kind: input, shape index: {}]
  %s3 = inlined_call_operand.hbm [shape: f32[2,1,8,16,128], index: 3, kind: input, shape index: {}]
  %s4 = inlined_call_operand.vmem [shape: f32[2,1,128], index: 4, kind: output, shape index: {}]
  %s5 = sld [smem:[#allocation0]]
  $region61: #{laplacian_loss_interface.1} parent=0
    _
  %s7 = ssub.s32 1, %s5
  %s8 = scalar_select 0, %s7, %s5
  $region1: #{laplacian_loss_interface.1} parent=0
    #allocation2 [shape = 'u8[512]{0}', space=smem, size = 0x200, scoped, tag = 'input window, operand 0, single buffered']
    #allocation3 [shape = 's32[2]{0}', space=sflag, size = 0x8, scoped, tag = 'scoped memory for laplacian_loss_interface.1']
    #allocation4 [shape = 's32[2]{0}', space=sflag, size = 0x8, scoped, tag = 'scoped memory for laplacian_loss_interface.1']
    #allocation5 [shape = 'u8[131072]{0}', space=vmem, size = 0x20000, scoped, tag = 'input window, operand 2']
    #allocation6 [shape = 'u8[131072]{0}', space=vmem, size = 0x20000, scoped, tag = 'input window, operand 3']
    #allocation7 [shape = 's32[2]{0}', space=sflag, size = 0x8, scoped, tag = 'scoped memory for laplacian_loss_interface.1']
    %9 = vsyncpa [#allocation4], 0
    %10 = vsyncpa [#allocation3], 0
    %s11 = scalar_lea.sflag [#allocation3], 1
    %12 = vsyncpa %s11, 0
    %13 = vsyncpa [#allocation7], 0
    %s14 = scalar_lea.sflag [#allocation7], 1
    %15 = vsyncpa %s14, 0
    loop: start=0, step=1, limit=4
    $region2: #{laplacian_loss_interface.1} parent=1 // loop_pre_header
      _
    $region3: #{laplacian_loss_interface.1} parent=1 // loop_header
      %s17 = sphi 0, %s21
      %p18 = scmp.ge.s32.totalorder %s17, 4
      %s25 = sphi 0, %s25
      %s27 = sphi 0, %s25
      %s28 = sphi 0, %s27
      %s42 = sphi 0, %s28
      %s46 = sphi 0, %s46
      %s48 = sphi 0, %s46
      %s49 = sphi 0, %s48
      %s63 = sphi 0, %s49
      %s69 = sphi 0, %s71
      %s72 = sphi 0, %s69
      %s73 = sphi 0, %s72
      %s89 = sphi 0, %s73
      %s95 = sphi 0, %s97
      %s98 = sphi 0, %s95
      %s99 = sphi 0, %s98
      %s115 = sphi 0, %s99
      %s121 = sphi 0, %s123
      %s124 = sphi 0, %s121
      %s125 = sphi 0, %s124
      %s141 = sphi 0, %s125
    $region4: #{laplacian_loss_interface.1} parent=1 // loop_header_branch
      %20 = sbr.rel (%p18) target = $region8
    $region5: #{laplacian_loss_interface.1} parent=1 // loop_body
      %s22 = ssub.s32 %s17, 1
      %s23 = ssub.s32 %s17, 2
      %s24 = sadd.s32 %s17, 1
      %s26 = sadd.s32 %s25, 1
      %p29 = scmp.eq.s32.totalorder %s17, 1
      %p30 = scmp.ne.s32.totalorder %s25, %s27
      %p31 = scmp.eq.s32.totalorder %s17, 0
      %p32 = por %p30, %p31
      %p33 = scmp.ne.s32.totalorder %s25, %s27
      %p34 = scmp.eq.s32.totalorder %s22, 1
      %p35 = por %p33, %p34
      %p36 = scmp.ne.s32.totalorder %s27, %s28
      %p37 = scmp.eq.s32.totalorder %s22, 0
      %p38 = por %p36, %p37
      %p39 = scmp.ne.s32.totalorder %s27, %s28
      %p40 = scmp.eq.s32.totalorder %s23, 1
      %p41 = por %p39, %p40
      %p43 = scmp.ne.s32.totalorder %s28, %s42
      %p44 = scmp.eq.s32.totalorder %s23, 0
      %p45 = por %p43, %p44
      %s47 = sadd.s32 %s46, 1
      %p50 = scmp.eq.s32.totalorder %s17, 1
      %p51 = scmp.ne.s32.totalorder %s46, %s48
      %p52 = scmp.eq.s32.totalorder %s17, 0
      %p53 = por %p51, %p52
      %p54 = scmp.ne.s32.totalorder %s46, %s48
      %p55 = scmp.eq.s32.totalorder %s22, 1
      %p56 = por %p54, %p55
      %p57 = scmp.ne.s32.totalorder %s48, %s49
      %p58 = scmp.eq.s32.totalorder %s22, 0
      %p59 = por %p57, %p58
      %p60 = scmp.ne.s32.totalorder %s48, %s49
      %p61 = scmp.eq.s32.totalorder %s23, 1
      %p62 = por %p60, %p61
      %p64 = scmp.ne.s32.totalorder %s49, %s63
      %p65 = scmp.eq.s32.totalorder %s23, 0
      %p66 = por %p64, %p65
      %s67 = ssub.s32 %s17, %s24
      %p68 = scmp.eq.s32.totalorder %s67, 0
      %s70 = sadd.s32 %s69, 1
      %s71 = scalar_select %p68, %s69, %s70
      %p74 = pneg %p68
      %p75 = scmp.eq.s32.totalorder %s17, 1
      %p76 = por %p74, %p75
      %p77 = scmp.ne.s32.totalorder %s69, %s72
      %p78 = scmp.eq.s32.totalorder %s17, 0
      %p79 = por %p77, %p78
      %p80 = scmp.ne.s32.totalorder %s69, %s72
      %p81 = scmp.eq.s32.totalorder %s22, 1
      %p82 = por %p80, %p81
      %p83 = scmp.ne.s32.totalorder %s72, %s73
      %p84 = scmp.eq.s32.totalorder %s22, 0
      %p85 = por %p83, %p84
      %p86 = scmp.ne.s32.totalorder %s72, %s73
      %p87 = scmp.eq.s32.totalorder %s23, 1
      %p88 = por %p86, %p87
      %p90 = scmp.ne.s32.totalorder %s73, %s89
      %p91 = scmp.eq.s32.totalorder %s23, 0
      %p92 = por %p90, %p91
      %s93 = ssub.s32 %s17, %s24
      %p94 = scmp.eq.s32.totalorder %s93, 0
      %s96 = sadd.s32 %s95, 1
      %s97 = scalar_select %p94, %s95, %s96
      %p100 = pneg %p94
      %p101 = scmp.eq.s32.totalorder %s17, 1
      %p102 = por %p100, %p101
      %p103 = scmp.ne.s32.totalorder %s95, %s98
      %p104 = scmp.eq.s32.totalorder %s17, 0
      %p105 = por %p103, %p104
      %p106 = scmp.ne.s32.totalorder %s95, %s98
      %p107 = scmp.eq.s32.totalorder %s22, 1
      %p108 = por %p106, %p107
      %p109 = scmp.ne.s32.totalorder %s98, %s99
      %p110 = scmp.eq.s32.totalorder %s22, 0
      %p111 = por %p109, %p110
      %p112 = scmp.ne.s32.totalorder %s98, %s99
      %p113 = scmp.eq.s32.totalorder %s23, 1
      %p114 = por %p112, %p113
      %p116 = scmp.ne.s32.totalorder %s99, %s115
      %p117 = scmp.eq.s32.totalorder %s23, 0
      %p118 = por %p116, %p117
      %s119 = ssub.s32 %s17, %s24
      %p120 = scmp.eq.s32.totalorder %s119, 0
      %s122 = sadd.s32 %s121, 1
      %s123 = scalar_select %p120, %s121, %s122
      %p126 = pneg %p120
      %p127 = scmp.eq.s32.totalorder %s17, 1
      %p128 = por %p126, %p127
      %p129 = scmp.ne.s32.totalorder %s121, %s124
      %p130 = scmp.eq.s32.totalorder %s17, 0
      %p131 = por %p129, %p130
      %p132 = scmp.ne.s32.totalorder %s121, %s124
      %p133 = scmp.eq.s32.totalorder %s22, 1
      %p134 = por %p132, %p133
      %p135 = scmp.ne.s32.totalorder %s124, %s125
      %p136 = scmp.eq.s32.totalorder %s22, 0
      %p137 = por %p135, %p136
      %p138 = scmp.ne.s32.totalorder %s124, %s125
      %p139 = scmp.eq.s32.totalorder %s23, 1
      %p140 = por %p138, %p139
      %p142 = scmp.ne.s32.totalorder %s125, %s141
      %p143 = scmp.eq.s32.totalorder %s23, 0
      %p144 = por %p142, %p143
      %p145 = scmp.le.s32.totalorder 1, %s17
      %p146 = scmp.lt.s32.totalorder %s17, 3
      %p147 = pnand %p145, %p146
      %p148 = pneg %p147
      // Predicated region
      $region9: #{laplacian_loss_interface.1} parent=5 // pred_check
        _
      $region10: #{laplacian_loss_interface.1} parent=5 // pred_check_branch
        %150 = sbr.rel (%p147) target = $region12
      $region11: #{laplacian_loss_interface.1} parent=5 // pred_region
        %s151 = ssub.s32 %s17, 1
        // Predicated region
        $region13: #{laplacian_loss_interface.1} parent=11 // pred_check
          %p152 = pneg %p38
        $region14: #{laplacian_loss_interface.1} parent=11 // pred_check_branch
          %154 = sbr.rel (%p152) target = $region16
        $region15: #{laplacian_loss_interface.1} parent=11 // pred_region
          %s156 = ssub.s32 16, 16
          %157 = vsyncadd [#allocation4], %s156
          %s159 = sshll.u32 %s0, 4
          %s160 = int_to_ptr.vmem [resolvable:$true] %s159
          %162 = dma.vmem_to_smem %s160, 16, [#allocation2], [#allocation4]
        $region16: #{laplacian_loss_interface.1} parent=11 // pred_fallthru
          _
        // Predicated region
        $region17: #{laplacian_loss_interface.1} parent=11 // pred_check
          %p163 = pneg %p59
        $region18: #{laplacian_loss_interface.1} parent=11 // pred_check_branch
          %165 = sbr.rel (%p163) target = $region20
        $region19: #{laplacian_loss_interface.1} parent=11 // pred_region
          _
        $region20: #{laplacian_loss_interface.1} parent=11 // pred_fallthru
          _
      $region12: #{laplacian_loss_interface.1} parent=5 // pred_fallthru
        _
      %p166 = scmp.lt.s32.totalorder %s17, 2
      // Predicated region
      $region21: #{laplacian_loss_interface.1} parent=5 // pred_check
        %p167 = pneg %p166
      $region22: #{laplacian_loss_interface.1} parent=5 // pred_check_branch
        %169 = sbr.rel (%p167) target = $region24
      $region23: #{laplacian_loss_interface.1} parent=5 // pred_region
        // Predicated region
        $region25: #{laplacian_loss_interface.1} parent=23 // pred_check
          %p170 = pneg %p79
        $region26: #{laplacian_loss_interface.1} parent=23 // pred_check_branch
          %172 = sbr.rel (%p170) target = $region28
        $region27: #{laplacian_loss_interface.1} parent=23 // pred_region
          %s173 = sand.u32 %s69, 1
          %s174 = scalar_lea.sflag [#allocation3], %s173
          %s175 = sand.u32 %s69, 1
          %s176 = smul.addr %s175, 128
          %s177 = scalar_lea.vmem [#allocation5], %s176
          %s179 = ssub.s32 2048, 2048
          %180 = vsyncadd %s174, %s179
          %s181 = smul.addr %s17, 64
          %s182 = smul.addr %s181, 128
          %s183 = scalar_lea.hbm %s2, %s182
          %s184 = sshll.u32 %s177, 4
          %s185 = int_to_ptr.vmem [resolvable:$true] %s184
          %190 = dma.hbm_to_vmem [thread:$0]  %s183, 2048, %s185, %s174, 128, 128, 8
        $region28: #{laplacian_loss_interface.1} parent=23 // pred_fallthru
          _
        // Predicated region
        $region29: #{laplacian_loss_interface.1} parent=23 // pred_check
          %p191 = pneg %p105
        $region30: #{laplacian_loss_interface.1} parent=23 // pred_check_branch
          %193 = sbr.rel (%p191) target = $region32
        $region31: #{laplacian_loss_interface.1} parent=23 // pred_region
          %s194 = sand.u32 %s95, 1
          %s195 = scalar_lea.sflag [#allocation7], %s194
          %s196 = sand.u32 %s95, 1
          %s197 = smul.addr %s196, 128
          %s198 = scalar_lea.vmem [#allocation6], %s197
          %s200 = ssub.s32 2048, 2048
          %201 = vsyncadd %s195, %s200
          %s202 = smul.addr %s17, 16
          %s203 = smul.addr %s202, 128
          %s204 = scalar_lea.hbm %s3, %s203
          %s205 = sshll.u32 %s198, 4
          %s206 = int_to_ptr.vmem [resolvable:$true] %s205
          %211 = dma.hbm_to_vmem [thread:$0]  %s204, 2048, %s206, %s195, 128, 128, 8
        $region32: #{laplacian_loss_interface.1} parent=23 // pred_fallthru
          _
      $region24: #{laplacian_loss_interface.1} parent=5 // pred_fallthru
        _
      %p212 = scmp.le.s32.totalorder 1, %s17
      %p213 = scmp.lt.s32.totalorder %s17, 3
      %p214 = pnand %p212, %p213
      %p215 = pneg %p214
      // Predicated region
      $region33: #{laplacian_loss_interface.1} parent=5 // pred_check
        _
      $region34: #{laplacian_loss_interface.1} parent=5 // pred_check_branch
        %217 = sbr.rel (%p214) target = $region36
      $region35: #{laplacian_loss_interface.1} parent=5 // pred_region
        %s218 = ssub.s32 %s17, 1
        // Predicated region
        $region37: #{laplacian_loss_interface.1} parent=35 // pred_check
          %p219 = pneg %p38
        $region38: #{laplacian_loss_interface.1} parent=35 // pred_check_branch
          %221 = sbr.rel (%p219) target = $region40
        $region39: #{laplacian_loss_interface.1} parent=35 // pred_region
          %222 = dma.done [#allocation4], 16
        $region40: #{laplacian_loss_interface.1} parent=35 // pred_fallthru
          _
        %s223 = sand.u32 %s72, 1
        %s224 = scalar_lea.sflag [#allocation3], %s223
        %s225 = sand.u32 %s72, 1
        %s226 = smul.addr %s225, 128
        %s227 = scalar_lea.vmem [#allocation5], %s226
        // Predicated region
        $region41: #{laplacian_loss_interface.1} parent=35 // pred_check
          %p228 = pneg %p85
        $region42: #{laplacian_loss_interface.1} parent=35 // pred_check_branch
          %230 = sbr.rel (%p228) target = $region44
        $region43: #{laplacian_loss_interface.1} parent=35 // pred_region
          %231 = dma.done %s224, 2048
        $region44: #{laplacian_loss_interface.1} parent=35 // pred_fallthru
          _
        %s232 = sand.u32 %s98, 1
        %s233 = scalar_lea.sflag [#allocation7], %s232
        %s234 = sand.u32 %s98, 1
        %s235 = smul.addr %s234, 128
        %s236 = scalar_lea.vmem [#allocation6], %s235
        // Predicated region
        $region45: #{laplacian_loss_interface.1} parent=35 // pred_check
          %p237 = pneg %p111
        $region46: #{laplacian_loss_interface.1} parent=35 // pred_check_branch
          %239 = sbr.rel (%p237) target = $region48
        $region47: #{laplacian_loss_interface.1} parent=35 // pred_region
          %240 = dma.done %s233, 2048
        $region48: #{laplacian_loss_interface.1} parent=35 // pred_fallthru
          _
        %241 = sfence
        %p242 = pneg %p38
        %p243 = pneg %p35
        %p244 = pneg %p59
        %p245 = pneg %p56
        %s246 = sand.u32 %s72, 1
        %s247 = scalar_lea.sflag [#allocation3], %s246
        %s248 = sand.u32 %s72, 1
        %s249 = smul.addr %s248, 128
        %s250 = scalar_lea.vmem [#allocation5], %s249
        %p251 = pneg %p85
        %p252 = pneg %p82
        %s253 = sand.u32 %s98, 1
        %s254 = scalar_lea.sflag [#allocation7], %s253
        %s255 = sand.u32 %s98, 1
        %s256 = smul.addr %s255, 128
        %s257 = scalar_lea.vmem [#allocation6], %s256
        %p258 = pneg %p111
        %p259 = pneg %p108
        %p260 = pneg %p137
        %p261 = pneg %p134
        %p262 = scmp.lt.s32.totalorder %s22, 1
        %s263 = scalar_select %p262, %s22, 1
        %s264 = scalar_lea.vmem %s4, %s263
        %p265 = scmp.lt.s32.totalorder %s22, 1
        %s266 = scalar_select %p265, %s22, 1
        %s267 = scalar_lea.vmem %s4, %s266
        %s268 = sld [smem:[#allocation2]]
        %s269 = sld [smem:[#allocation2 + $0x1]]
        %s270 = sld [smem:[#allocation2 + $0x2]]
        %s271 = sld [smem:[#allocation2 + $0x3]]
        %s272 = sld [smem:[#allocation2 + $0x4]]
        %s273 = sld [smem:[#allocation2 + $0x5]]
        %v274 = vld [vmem:[%s1] sm:$0xff]
        %v275 = vld [vmem:[%s1 + $0x8] sm:$0xff]
        %v276 = vld [vmem:[%s1 + $0x10] sm:$0xff]
        %v277 = vld [vmem:[%s1 + $0x18] sm:$0xff]
        %v278 = vld [vmem:[%s1 + $0x20] sm:$0xff]
        %v279 = vld [vmem:[%s1 + $0x28] sm:$0xff]
        %v280 = vld [vmem:[%s1 + $0x30] sm:$0xff]
        %v281 = vld [vmem:[%s1 + $0x38] sm:$0xff]
        %v282 = vld [vmem:[%s1 + $0x40] sm:$0xff]
        %v283 = vld [vmem:[%s1 + $0x48] sm:$0xff]
        %v284 = vld [vmem:[%s1 + $0x50] sm:$0xff]
        %v285 = vld [vmem:[%s1 + $0x58] sm:$0xff]
        %v286 = vld [vmem:[%s1 + $0x60] sm:$0xff]
        %v287 = vld [vmem:[%s1 + $0x68] sm:$0xff]
        %v288 = vld [vmem:[%s1 + $0x70] sm:$0xff]
        %v289 = vld [vmem:[%s1 + $0x78] sm:$0xff]
        %v290 = vld [vmem:[%s227] sm:$0xff]
        %v291 = vld [vmem:[%s227 + $0x8] sm:$0xff]
        %v292 = vld [vmem:[%s227 + $0x10] sm:$0xff]
        %v293 = vld [vmem:[%s227 + $0x18] sm:$0xff]
        %v294 = vld [vmem:[%s227 + $0x20] sm:$0xff]
        %v295 = vld [vmem:[%s227 + $0x28] sm:$0xff]
        %v296 = vld [vmem:[%s227 + $0x30] sm:$0xff]
        %v297 = vld [vmem:[%s227 + $0x38] sm:$0xff]
        %v298 = vld [vmem:[%s227 + $0x40] sm:$0xff]
        %v299 = vld [vmem:[%s227 + $0x48] sm:$0xff]
        %v300 = vld [vmem:[%s227 + $0x50] sm:$0xff]
        %v301 = vld [vmem:[%s227 + $0x58] sm:$0xff]
        %v302 = vld [vmem:[%s227 + $0x60] sm:$0xff]
        %v303 = vld [vmem:[%s227 + $0x68] sm:$0xff]
        %v304 = vld [vmem:[%s227 + $0x70] sm:$0xff]
        %v305 = vld [vmem:[%s227 + $0x78] sm:$0xff]
        %v306 = vstv %s268
        %v307 = vrcp.pop %v306
        %v308 = vmul.f32 %v290, %v307
        %v309 = vmul.f32 %v291, %v307
        %v310 = vmul.f32 %v292, %v307
        %v311 = vmul.f32 %v293, %v307
        %v312 = vmul.f32 %v294, %v307
        %v313 = vmul.f32 %v295, %v307
        %v314 = vmul.f32 %v296, %v307
        %v315 = vmul.f32 %v297, %v307
        %v316 = vmul.f32 %v298, %v307
        %v317 = vmul.f32 %v299, %v307
        %v318 = vmul.f32 %v300, %v307
        %v319 = vmul.f32 %v301, %v307
        %v320 = vmul.f32 %v302, %v307
        %v321 = vmul.f32 %v303, %v307
        %v322 = vmul.f32 %v304, %v307
        %v323 = vmul.f32 %v305, %v307
        %v324 = vld [vmem:[%s236] sm:$0xff]
        %v325 = vld [vmem:[%s236 + $0x8] sm:$0xff]
        %v326 = vld [vmem:[%s236 + $0x10] sm:$0xff]
        %v327 = vld [vmem:[%s236 + $0x18] sm:$0xff]
        %v328 = vld [vmem:[%s236 + $0x20] sm:$0xff]
        %v329 = vld [vmem:[%s236 + $0x28] sm:$0xff]
        %v330 = vld [vmem:[%s236 + $0x30] sm:$0xff]
        %v331 = vld [vmem:[%s236 + $0x38] sm:$0xff]
        %v332 = vld [vmem:[%s236 + $0x40] sm:$0xff]
        %v333 = vld [vmem:[%s236 + $0x48] sm:$0xff]
        %v334 = vld [vmem:[%s236 + $0x50] sm:$0xff]
        %v335 = vld [vmem:[%s236 + $0x58] sm:$0xff]
        %v336 = vld [vmem:[%s236 + $0x60] sm:$0xff]
        %v337 = vld [vmem:[%s236 + $0x68] sm:$0xff]
        %v338 = vld [vmem:[%s236 + $0x70] sm:$0xff]
        %v339 = vld [vmem:[%s236 + $0x78] sm:$0xff]
        %v340 = vstv %s272
        %v341 = vmul.f32 %v274, %v340
        %v342 = vmul.f32 %v275, %v340
        %v343 = vmul.f32 %v276, %v340
        %v344 = vmul.f32 %v277, %v340
        %v345 = vmul.f32 %v278, %v340
        %v346 = vmul.f32 %v279, %v340
        %v347 = vmul.f32 %v280, %v340
        %v348 = vmul.f32 %v281, %v340
        %v349 = vmul.f32 %v282, %v340
        %v350 = vmul.f32 %v283, %v340
        %v351 = vmul.f32 %v284, %v340
        %v352 = vmul.f32 %v285, %v340
        %v353 = vmul.f32 %v286, %v340
        %v354 = vmul.f32 %v287, %v340
        %v355 = vmul.f32 %v288, %v340
        %v356 = vmul.f32 %v289, %v340
        %v357 = vsub.f32 1.0, %v274
        %v358 = vsub.f32 1.0, %v275
        %v359 = vsub.f32 1.0, %v276
        %v360 = vsub.f32 1.0, %v277
        %v361 = vsub.f32 1.0, %v278
        %v362 = vsub.f32 1.0, %v279
        %v363 = vsub.f32 1.0, %v280
        %v364 = vsub.f32 1.0, %v281
        %v365 = vsub.f32 1.0, %v282
        %v366 = vsub.f32 1.0, %v283
        %v367 = vsub.f32 1.0, %v284
        %v368 = vsub.f32 1.0, %v285
        %v369 = vsub.f32 1.0, %v286
        %v370 = vsub.f32 1.0, %v287
        %v371 = vsub.f32 1.0, %v288
        %v372 = vsub.f32 1.0, %v289
        %v373 = vstv %s273
        %v374 = vmul.f32 %v357, %v373
        %v375 = vmul.f32 %v358, %v373
        %v376 = vmul.f32 %v359, %v373
        %v377 = vmul.f32 %v360, %v373
        %v378 = vmul.f32 %v361, %v373
        %v379 = vmul.f32 %v362, %v373
        %v380 = vmul.f32 %v363, %v373
        %v381 = vmul.f32 %v364, %v373
        %v382 = vmul.f32 %v365, %v373
        %v383 = vmul.f32 %v366, %v373
        %v384 = vmul.f32 %v367, %v373
        %v385 = vmul.f32 %v368, %v373
        %v386 = vmul.f32 %v369, %v373
        %v387 = vmul.f32 %v370, %v373
        %v388 = vmul.f32 %v371, %v373
        %v389 = vmul.f32 %v372, %v373
        %v390 = vadd.f32 %v341, %v374
        %v391 = vadd.f32 %v342, %v375
        %v392 = vadd.f32 %v343, %v376
        %v393 = vadd.f32 %v344, %v377
        %v394 = vadd.f32 %v345, %v378
        %v395 = vadd.f32 %v346, %v379
        %v396 = vadd.f32 %v347, %v380
        %v397 = vadd.f32 %v348, %v381
        %v398 = vadd.f32 %v349, %v382
        %v399 = vadd.f32 %v350, %v383
        %v400 = vadd.f32 %v351, %v384
        %v401 = vadd.f32 %v352, %v385
        %v402 = vadd.f32 %v353, %v386
        %v403 = vadd.f32 %v354, %v387
        %v404 = vadd.f32 %v355, %v388
        %v405 = vadd.f32 %v356, %v389
        %v406 = vmul.f32 %v392, 2.0
        %v407 = vmul.f32 %v393, 2.0
        %v408 = vmul.f32 %v394, 2.0
        %v409 = vmul.f32 %v395, 2.0
        %v410 = vmul.f32 %v396, 2.0
        %v411 = vmul.f32 %v397, 2.0
        %v412 = vmul.f32 %v398, 2.0
        %v413 = vmul.f32 %v399, 2.0
        %v414 = vmul.f32 %v400, 2.0
        %v415 = vmul.f32 %v401, 2.0
        %v416 = vmul.f32 %v402, 2.0
        %v417 = vmul.f32 %v403, 2.0
        %430 = vrot.lane.b32.xlu0 %v392, 127
        %v431 = vpop.permute.xlu0 %430
        %432 = vrot.lane.b32.xlu0 %v393, 127
        %v433 = vpop.permute.xlu0 %432
        %434 = vrot.lane.b32.xlu0 %v394, 127
        %v435 = vpop.permute.xlu0 %434
        %436 = vrot.lane.b32.xlu0 %v395, 127
        %v437 = vpop.permute.xlu0 %436
        %438 = vrot.lane.b32.xlu0 %v396, 127
        %v439 = vpop.permute.xlu0 %438
        %440 = vrot.lane.b32.xlu0 %v397, 127
        %v441 = vpop.permute.xlu0 %440
        %442 = vrot.lane.b32.xlu0 %v398, 127
        %v443 = vpop.permute.xlu0 %442
        %444 = vrot.lane.b32.xlu0 %v399, 127
        %v445 = vpop.permute.xlu0 %444
        %446 = vrot.lane.b32.xlu0 %v400, 127
        %v447 = vpop.permute.xlu0 %446
        %448 = vrot.lane.b32.xlu0 %v401, 127
        %v449 = vpop.permute.xlu0 %448
        %450 = vrot.lane.b32.xlu0 %v402, 127
        %v451 = vpop.permute.xlu0 %450
        %452 = vrot.lane.b32.xlu0 %v403, 127
        %v453 = vpop.permute.xlu0 %452
        %v466 = vmul.f32 %v406, %v431
        %v467 = vmul.f32 %v407, %v433
        %v468 = vmul.f32 %v408, %v435
        %v469 = vmul.f32 %v409, %v437
        %v470 = vmul.f32 %v410, %v439
        %v471 = vmul.f32 %v411, %v441
        %v472 = vmul.f32 %v412, %v443
        %v473 = vmul.f32 %v413, %v445
        %v474 = vmul.f32 %v414, %v447
        %v475 = vmul.f32 %v415, %v449
        %v476 = vmul.f32 %v416, %v451
        %v477 = vmul.f32 %v417, %v453
        %v478 = vadd.f32 %v392, %v431
        %v479 = vadd.f32 %v393, %v433
        %v480 = vadd.f32 %v394, %v435
        %v481 = vadd.f32 %v395, %v437
        %v482 = vadd.f32 %v396, %v439
        %v483 = vadd.f32 %v397, %v441
        %v484 = vadd.f32 %v398, %v443
        %v485 = vadd.f32 %v399, %v445
        %v486 = vadd.f32 %v400, %v447
        %v487 = vadd.f32 %v401, %v449
        %v488 = vadd.f32 %v402, %v451
        %v489 = vadd.f32 %v403, %v453
        %v490 = vrcp.pop %v478
        %v491 = vmul.f32 %v466, %v490
        %v492 = vrcp.pop %v479
        %v493 = vmul.f32 %v467, %v492
        %v494 = vrcp.pop %v480
        %v495 = vmul.f32 %v468, %v494
        %v496 = vrcp.pop %v481
        %v497 = vmul.f32 %v469, %v496
        %v498 = vrcp.pop %v482
        %v499 = vmul.f32 %v470, %v498
        %v500 = vrcp.pop %v483
        %v501 = vmul.f32 %v471, %v500
        %v502 = vrcp.pop %v484
        %v503 = vmul.f32 %v472, %v502
        %v504 = vrcp.pop %v485
        %v505 = vmul.f32 %v473, %v504
        %v506 = vrcp.pop %v486
        %v507 = vmul.f32 %v474, %v506
        %v508 = vrcp.pop %v487
        %v509 = vmul.f32 %v475, %v508
        %v510 = vrcp.pop %v488
        %v511 = vmul.f32 %v476, %v510
        %v512 = vrcp.pop %v489
        %v513 = vmul.f32 %v477, %v512
        %526 = vrot.lane.b32.xlu0 %v310, 1
        %v527 = vpop.permute.xlu0 %526
        %528 = vrot.lane.b32.xlu0 %v311, 1
        %v529 = vpop.permute.xlu0 %528
        %530 = vrot.lane.b32.xlu0 %v312, 1
        %v531 = vpop.permute.xlu0 %530
        %532 = vrot.lane.b32.xlu0 %v313, 1
        %v533 = vpop.permute.xlu0 %532
        %534 = vrot.lane.b32.xlu0 %v314, 1
        %v535 = vpop.permute.xlu0 %534
        %536 = vrot.lane.b32.xlu0 %v315, 1
        %v537 = vpop.permute.xlu0 %536
        %538 = vrot.lane.b32.xlu0 %v316, 1
        %v539 = vpop.permute.xlu0 %538
        %540 = vrot.lane.b32.xlu0 %v317, 1
        %v541 = vpop.permute.xlu0 %540
        %542 = vrot.lane.b32.xlu0 %v318, 1
        %v543 = vpop.permute.xlu0 %542
        %544 = vrot.lane.b32.xlu0 %v319, 1
        %v545 = vpop.permute.xlu0 %544
        %546 = vrot.lane.b32.xlu0 %v320, 1
        %v547 = vpop.permute.xlu0 %546
        %548 = vrot.lane.b32.xlu0 %v321, 1
        %v549 = vpop.permute.xlu0 %548
        %v562 = vsub.f32 %v310, %v527
        %v563 = vsub.f32 %v311, %v529
        %v564 = vsub.f32 %v312, %v531
        %v565 = vsub.f32 %v313, %v533
        %v566 = vsub.f32 %v314, %v535
        %v567 = vsub.f32 %v315, %v537
        %v568 = vsub.f32 %v316, %v539
        %v569 = vsub.f32 %v317, %v541
        %v570 = vsub.f32 %v318, %v543
        %v571 = vsub.f32 %v319, %v545
        %v572 = vsub.f32 %v320, %v547
        %v573 = vsub.f32 %v321, %v549
        %586 = vrot.lane.b32.xlu0 %v562, 127
        %v587 = vpop.permute.xlu0 %586
        %588 = vrot.lane.b32.xlu0 %v563, 127
        %v589 = vpop.permute.xlu0 %588
        %590 = vrot.lane.b32.xlu0 %v564, 127
        %v591 = vpop.permute.xlu0 %590
        %592 = vrot.lane.b32.xlu0 %v565, 127
        %v593 = vpop.permute.xlu0 %592
        %594 = vrot.lane.b32.xlu0 %v566, 127
        %v595 = vpop.permute.xlu0 %594
        %596 = vrot.lane.b32.xlu0 %v567, 127
        %v597 = vpop.permute.xlu0 %596
        %598 = vrot.lane.b32.xlu0 %v568, 127
        %v599 = vpop.permute.xlu0 %598
        %600 = vrot.lane.b32.xlu0 %v569, 127
        %v601 = vpop.permute.xlu0 %600
        %602 = vrot.lane.b32.xlu0 %v570, 127
        %v603 = vpop.permute.xlu0 %602
        %604 = vrot.lane.b32.xlu0 %v571, 127
        %v605 = vpop.permute.xlu0 %604
        %606 = vrot.lane.b32.xlu0 %v572, 127
        %v607 = vpop.permute.xlu0 %606
        %608 = vrot.lane.b32.xlu0 %v573, 127
        %v609 = vpop.permute.xlu0 %608
        %v622 = vmul.f32 %v491, %v587
        %v623 = vmul.f32 %v493, %v589
        %v624 = vmul.f32 %v495, %v591
        %v625 = vmul.f32 %v497, %v593
        %v626 = vmul.f32 %v499, %v595
        %v627 = vmul.f32 %v501, %v597
        %v628 = vmul.f32 %v503, %v599
        %v629 = vmul.f32 %v505, %v601
        %v630 = vmul.f32 %v507, %v603
        %v631 = vmul.f32 %v509, %v605
        %v632 = vmul.f32 %v511, %v607
        %v633 = vmul.f32 %v513, %v609
        %v634 = vstv %s269
        %v635 = vrcp.pop %v634
        %v636 = vmul.f32 %v622, %v635
        %v637 = vmul.f32 %v623, %v635
        %v638 = vmul.f32 %v624, %v635
        %v639 = vmul.f32 %v625, %v635
        %v640 = vmul.f32 %v626, %v635
        %v641 = vmul.f32 %v627, %v635
        %v642 = vmul.f32 %v628, %v635
        %v643 = vmul.f32 %v629, %v635
        %v644 = vmul.f32 %v630, %v635
        %v645 = vmul.f32 %v631, %v635
        %v646 = vmul.f32 %v632, %v635
        %v647 = vmul.f32 %v633, %v635
        %vm648 = vcmask 1046528
        %v649 = vrot.slane %v392, 1
        %v650 = vrot.slane %v393, 1
        %v651 = vsel %vm648, %v649, %v650
        %v652 = vrot.slane %v394, 1
        %v653 = vrot.slane %v395, 1
        %v654 = vsel %vm648, %v652, %v653
        %v655 = vrot.slane %v396, 1
        %v656 = vrot.slane %v397, 1
        %v657 = vsel %vm648, %v655, %v656
        %v658 = vrot.slane %v398, 1
        %v659 = vrot.slane %v399, 1
        %v660 = vsel %vm648, %v658, %v659
        %v661 = vrot.slane %v400, 1
        %v662 = vrot.slane %v401, 1
        %v663 = vsel %vm648, %v661, %v662
        %v664 = vrot.slane %v402, 1
        %v665 = vrot.slane %v403, 1
        %v666 = vsel %vm648, %v664, %v665
        %v679 = vmul.f32 %v406, %v651
        %v680 = vmul.f32 %v407, %v650
        %v681 = vmul.f32 %v408, %v654
        %v682 = vmul.f32 %v409, %v653
        %v683 = vmul.f32 %v410, %v657
        %v684 = vmul.f32 %v411, %v656
        %v685 = vmul.f32 %v412, %v660
        %v686 = vmul.f32 %v413, %v659
        %v687 = vmul.f32 %v414, %v663
        %v688 = vmul.f32 %v415, %v662
        %v689 = vmul.f32 %v416, %v666
        %v690 = vmul.f32 %v417, %v665
        %v691 = vadd.f32 %v392, %v651
        %v692 = vadd.f32 %v393, %v650
        %v693 = vadd.f32 %v394, %v654
        %v694 = vadd.f32 %v395, %v653
        %v695 = vadd.f32 %v396, %v657
        %v696 = vadd.f32 %v397, %v656
        %v697 = vadd.f32 %v398, %v660
        %v698 = vadd.f32 %v399, %v659
        %v699 = vadd.f32 %v400, %v663
        %v700 = vadd.f32 %v401, %v662
        %v701 = vadd.f32 %v402, %v666
        %v702 = vadd.f32 %v403, %v665
        %v703 = vrcp.pop %v691
        %v704 = vmul.f32 %v679, %v703
        %v705 = vrcp.pop %v692
        %v706 = vmul.f32 %v680, %v705
        %v707 = vrcp.pop %v693
        %v708 = vmul.f32 %v681, %v707
        %v709 = vrcp.pop %v694
        %v710 = vmul.f32 %v682, %v709
        %v711 = vrcp.pop %v695
        %v712 = vmul.f32 %v683, %v711
        %v713 = vrcp.pop %v696
        %v714 = vmul.f32 %v684, %v713
        %v715 = vrcp.pop %v697
        %v716 = vmul.f32 %v685, %v715
        %v717 = vrcp.pop %v698
        %v718 = vmul.f32 %v686, %v717
        %v719 = vrcp.pop %v699
        %v720 = vmul.f32 %v687, %v719
        %v721 = vrcp.pop %v700
        %v722 = vmul.f32 %v688, %v721
        %v723 = vrcp.pop %v701
        %v724 = vmul.f32 %v689, %v723
        %v725 = vrcp.pop %v702
        %v726 = vmul.f32 %v690, %v725
        %vm727 = vcmask 1040384
        %v728 = vrot.slane %v310, 7
        %v729 = vrot.slane %v311, 7
        %v730 = vsel %vm727, %v728, %v729
        %v731 = vrot.slane %v312, 7
        %v732 = vrot.slane %v313, 7
        %v733 = vsel %vm727, %v731, %v732
        %v734 = vrot.slane %v314, 7
        %v735 = vrot.slane %v315, 7
        %v736 = vsel %vm727, %v734, %v735
        %v737 = vrot.slane %v316, 7
        %v738 = vrot.slane %v317, 7
        %v739 = vsel %vm727, %v737, %v738
        %v740 = vrot.slane %v318, 7
        %v741 = vrot.slane %v319, 7
        %v742 = vsel %vm727, %v740, %v741
        %v743 = vrot.slane %v320, 7
        %v744 = vrot.slane %v321, 7
        %v745 = vsel %vm727, %v743, %v744
        %v758 = vsub.f32 %v310, %v728
        %v759 = vsub.f32 %v311, %v730
        %v760 = vsub.f32 %v312, %v731
        %v761 = vsub.f32 %v313, %v733
        %v762 = vsub.f32 %v314, %v734
        %v763 = vsub.f32 %v315, %v736
        %v764 = vsub.f32 %v316, %v737
        %v765 = vsub.f32 %v317, %v739
        %v766 = vsub.f32 %v318, %v740
        %v767 = vsub.f32 %v319, %v742
        %v768 = vsub.f32 %v320, %v743
        %v769 = vsub.f32 %v321, %v745
        %v782 = vrot.slane %v758, 1
        %v783 = vrot.slane %v759, 1
        %v784 = vsel %vm648, %v782, %v783
        %v785 = vrot.slane %v760, 1
        %v786 = vrot.slane %v761, 1
        %v787 = vsel %vm648, %v785, %v786
        %v788 = vrot.slane %v762, 1
        %v789 = vrot.slane %v763, 1
        %v790 = vsel %vm648, %v788, %v789
        %v791 = vrot.slane %v764, 1
        %v792 = vrot.slane %v765, 1
        %v793 = vsel %vm648, %v791, %v792
        %v794 = vrot.slane %v766, 1
        %v795 = vrot.slane %v767, 1
        %v796 = vsel %vm648, %v794, %v795
        %v797 = vrot.slane %v768, 1
        %v798 = vrot.slane %v769, 1
        %v799 = vsel %vm648, %v797, %v798
        %v812 = vmul.f32 %v704, %v784
        %v813 = vmul.f32 %v706, %v783
        %v814 = vmul.f32 %v708, %v787
        %v815 = vmul.f32 %v710, %v786
        %v816 = vmul.f32 %v712, %v790
        %v817 = vmul.f32 %v714, %v789
        %v818 = vmul.f32 %v716, %v793
        %v819 = vmul.f32 %v718, %v792
        %v820 = vmul.f32 %v720, %v796
        %v821 = vmul.f32 %v722, %v795
        %v822 = vmul.f32 %v724, %v799
        %v823 = vmul.f32 %v726, %v798
        %v824 = vstv %s270
        %v825 = vrcp.pop %v824
        %v826 = vmul.f32 %v812, %v825
        %v827 = vmul.f32 %v813, %v825
        %v828 = vmul.f32 %v814, %v825
        %v829 = vmul.f32 %v815, %v825
        %v830 = vmul.f32 %v816, %v825
        %v831 = vmul.f32 %v817, %v825
        %v832 = vmul.f32 %v818, %v825
        %v833 = vmul.f32 %v819, %v825
        %v834 = vmul.f32 %v820, %v825
        %v835 = vmul.f32 %v821, %v825
        %v836 = vmul.f32 %v822, %v825
        %v837 = vmul.f32 %v823, %v825
        %v838 = vmul.f32 %v390, 2.0
        %v839 = vmul.f32 %v391, 2.0
        %v840 = vmul.f32 %v838, %v392
        %v841 = vmul.f32 %v839, %v393
        %v842 = vmul.f32 %v406, %v394
        %v843 = vmul.f32 %v407, %v395
        %v844 = vmul.f32 %v408, %v396
        %v845 = vmul.f32 %v409, %v397
        %v846 = vmul.f32 %v410, %v398
        %v847 = vmul.f32 %v411, %v399
        %v848 = vmul.f32 %v412, %v400
        %v849 = vmul.f32 %v413, %v401
        %v850 = vmul.f32 %v414, %v402
        %v851 = vmul.f32 %v415, %v403
        %v852 = vmul.f32 %v416, %v404
        %v853 = vmul.f32 %v417, %v405
        %v854 = vadd.f32 %v390, %v392
        %v855 = vadd.f32 %v391, %v393
        %v856 = vadd.f32 %v392, %v394
        %v857 = vadd.f32 %v393, %v395
        %v858 = vadd.f32 %v394, %v396
        %v859 = vadd.f32 %v395, %v397
        %v860 = vadd.f32 %v396, %v398
        %v861 = vadd.f32 %v397, %v399
        %v862 = vadd.f32 %v398, %v400
        %v863 = vadd.f32 %v399, %v401
        %v864 = vadd.f32 %v400, %v402
        %v865 = vadd.f32 %v401, %v403
        %v866 = vadd.f32 %v402, %v404
        %v867 = vadd.f32 %v403, %v405
        %v868 = vrcp.pop %v854
        %v869 = vmul.f32 %v840, %v868
        %v870 = vrcp.pop %v855
        %v871 = vmul.f32 %v841, %v870
        %v872 = vrcp.pop %v856
        %v873 = vmul.f32 %v842, %v872
        %v874 = vrcp.pop %v857
        %v875 = vmul.f32 %v843, %v874
        %v876 = vrcp.pop %v858
        %v877 = vmul.f32 %v844, %v876
        %v878 = vrcp.pop %v859
        %v879 = vmul.f32 %v845, %v878
        %v880 = vrcp.pop %v860
        %v881 = vmul.f32 %v846, %v880
        %v882 = vrcp.pop %v861
        %v883 = vmul.f32 %v847, %v882
        %v884 = vrcp.pop %v862
        %v885 = vmul.f32 %v848, %v884
        %v886 = vrcp.pop %v863
        %v887 = vmul.f32 %v849, %v886
        %v888 = vrcp.pop %v864
        %v889 = vmul.f32 %v850, %v888
        %v890 = vrcp.pop %v865
        %v891 = vmul.f32 %v851, %v890
        %v892 = vrcp.pop %v866
        %v893 = vmul.f32 %v852, %v892
        %v894 = vrcp.pop %v867
        %v895 = vmul.f32 %v853, %v894
        %v896 = vsub.f32 %v310, %v308
        %v897 = vsub.f32 %v311, %v309
        %v898 = vsub.f32 %v312, %v310
        %v899 = vsub.f32 %v313, %v311
        %v900 = vsub.f32 %v314, %v312
        %v901 = vsub.f32 %v315, %v313
        %v902 = vsub.f32 %v316, %v314
        %v903 = vsub.f32 %v317, %v315
        %v904 = vsub.f32 %v318, %v316
        %v905 = vsub.f32 %v319, %v317
        %v906 = vsub.f32 %v320, %v318
        %v907 = vsub.f32 %v321, %v319
        %v908 = vsub.f32 %v322, %v320
        %v909 = vsub.f32 %v323, %v321
        %v910 = vmul.f32 %v869, %v896
        %v911 = vmul.f32 %v871, %v897
        %v912 = vmul.f32 %v873, %v898
        %v913 = vmul.f32 %v875, %v899
        %v914 = vmul.f32 %v877, %v900
        %v915 = vmul.f32 %v879, %v901
        %v916 = vmul.f32 %v881, %v902
        %v917 = vmul.f32 %v883, %v903
        %v918 = vmul.f32 %v885, %v904
        %v919 = vmul.f32 %v887, %v905
        %v920 = vmul.f32 %v889, %v906
        %v921 = vmul.f32 %v891, %v907
        %v922 = vmul.f32 %v893, %v908
        %v923 = vmul.f32 %v895, %v909
        %v924 = vstv %s271
        %v925 = vrcp.pop %v924
        %v926 = vmul.f32 %v910, %v925
        %v927 = vmul.f32 %v911, %v925
        %v928 = vmul.f32 %v912, %v925
        %v929 = vmul.f32 %v913, %v925
        %v930 = vmul.f32 %v914, %v925
        %v931 = vmul.f32 %v915, %v925
        %v932 = vmul.f32 %v916, %v925
        %v933 = vmul.f32 %v917, %v925
        %v934 = vmul.f32 %v918, %v925
        %v935 = vmul.f32 %v919, %v925
        %v936 = vmul.f32 %v920, %v925
        %v937 = vmul.f32 %v921, %v925
        %v938 = vmul.f32 %v922, %v925
        %v939 = vmul.f32 %v923, %v925
        %952 = vrot.lane.b32.xlu0 %v636, 1
        %v953 = vpop.permute.xlu0 %952
        %954 = vrot.lane.b32.xlu0 %v637, 1
        %v955 = vpop.permute.xlu0 %954
        %956 = vrot.lane.b32.xlu0 %v638, 1
        %v957 = vpop.permute.xlu0 %956
        %958 = vrot.lane.b32.xlu0 %v639, 1
        %v959 = vpop.permute.xlu0 %958
        %960 = vrot.lane.b32.xlu0 %v640, 1
        %v961 = vpop.permute.xlu0 %960
        %962 = vrot.lane.b32.xlu0 %v641, 1
        %v963 = vpop.permute.xlu0 %962
        %964 = vrot.lane.b32.xlu0 %v642, 1
        %v965 = vpop.permute.xlu0 %964
        %966 = vrot.lane.b32.xlu0 %v643, 1
        %v967 = vpop.permute.xlu0 %966
        %968 = vrot.lane.b32.xlu0 %v644, 1
        %v969 = vpop.permute.xlu0 %968
        %970 = vrot.lane.b32.xlu0 %v645, 1
        %v971 = vpop.permute.xlu0 %970
        %972 = vrot.lane.b32.xlu0 %v646, 1
        %v973 = vpop.permute.xlu0 %972
        %974 = vrot.lane.b32.xlu0 %v647, 1
        %v975 = vpop.permute.xlu0 %974
        %v988 = vsub.f32 %v636, %v953
        %v989 = vsub.f32 %v637, %v955
        %v990 = vsub.f32 %v638, %v957
        %v991 = vsub.f32 %v639, %v959
        %v992 = vsub.f32 %v640, %v961
        %v993 = vsub.f32 %v641, %v963
        %v994 = vsub.f32 %v642, %v965
        %v995 = vsub.f32 %v643, %v967
        %v996 = vsub.f32 %v644, %v969
        %v997 = vsub.f32 %v645, %v971
        %v998 = vsub.f32 %v646, %v973
        %v999 = vsub.f32 %v647, %v975
        %v1000 = vmul.f32 %v988, %v635
        %v1001 = vmul.f32 %v989, %v635
        %v1002 = vmul.f32 %v990, %v635
        %v1003 = vmul.f32 %v991, %v635
        %v1004 = vmul.f32 %v992, %v635
        %v1005 = vmul.f32 %v993, %v635
        %v1006 = vmul.f32 %v994, %v635
        %v1007 = vmul.f32 %v995, %v635
        %v1008 = vmul.f32 %v996, %v635
        %v1009 = vmul.f32 %v997, %v635
        %v1010 = vmul.f32 %v998, %v635
        %v1011 = vmul.f32 %v999, %v635
        %v1024 = vrot.slane %v826, 7
        %v1025 = vrot.slane %v827, 7
        %v1026 = vsel %vm727, %v1024, %v1025
        %v1027 = vrot.slane %v828, 7
        %v1028 = vrot.slane %v829, 7
        %v1029 = vsel %vm727, %v1027, %v1028
        %v1030 = vrot.slane %v830, 7
        %v1031 = vrot.slane %v831, 7
        %v1032 = vsel %vm727, %v1030, %v1031
        %v1033 = vrot.slane %v832, 7
        %v1034 = vrot.slane %v833, 7
        %v1035 = vsel %vm727, %v1033, %v1034
        %v1036 = vrot.slane %v834, 7
        %v1037 = vrot.slane %v835, 7
        %v1038 = vsel %vm727, %v1036, %v1037
        %v1039 = vrot.slane %v836, 7
        %v1040 = vrot.slane %v837, 7
        %v1041 = vsel %vm727, %v1039, %v1040
        %v1054 = vsub.f32 %v826, %v1024
        %v1055 = vsub.f32 %v827, %v1026
        %v1056 = vsub.f32 %v828, %v1027
        %v1057 = vsub.f32 %v829, %v1029
        %v1058 = vsub.f32 %v830, %v1030
        %v1059 = vsub.f32 %v831, %v1032
        %v1060 = vsub.f32 %v832, %v1033
        %v1061 = vsub.f32 %v833, %v1035
        %v1062 = vsub.f32 %v834, %v1036
        %v1063 = vsub.f32 %v835, %v1038
        %v1064 = vsub.f32 %v836, %v1039
        %v1065 = vsub.f32 %v837, %v1041
        %v1066 = vmul.f32 %v1054, %v825
        %v1067 = vmul.f32 %v1055, %v825
        %v1068 = vmul.f32 %v1056, %v825
        %v1069 = vmul.f32 %v1057, %v825
        %v1070 = vmul.f32 %v1058, %v825
        %v1071 = vmul.f32 %v1059, %v825
        %v1072 = vmul.f32 %v1060, %v825
        %v1073 = vmul.f32 %v1061, %v825
        %v1074 = vmul.f32 %v1062, %v825
        %v1075 = vmul.f32 %v1063, %v825
        %v1076 = vmul.f32 %v1064, %v825
        %v1077 = vmul.f32 %v1065, %v825
        %v1078 = vadd.f32 %v1000, %v1066
        %v1079 = vadd.f32 %v1001, %v1067
        %v1080 = vadd.f32 %v1002, %v1068
        %v1081 = vadd.f32 %v1003, %v1069
        %v1082 = vadd.f32 %v1004, %v1070
        %v1083 = vadd.f32 %v1005, %v1071
        %v1084 = vadd.f32 %v1006, %v1072
        %v1085 = vadd.f32 %v1007, %v1073
        %v1086 = vadd.f32 %v1008, %v1074
        %v1087 = vadd.f32 %v1009, %v1075
        %v1088 = vadd.f32 %v1010, %v1076
        %v1089 = vadd.f32 %v1011, %v1077
        %v1090 = vsub.f32 %v928, %v926
        %v1091 = vsub.f32 %v929, %v927
        %v1092 = vsub.f32 %v930, %v928
        %v1093 = vsub.f32 %v931, %v929
        %v1094 = vsub.f32 %v932, %v930
        %v1095 = vsub.f32 %v933, %v931
        %v1096 = vsub.f32 %v934, %v932
        %v1097 = vsub.f32 %v935, %v933
        %v1098 = vsub.f32 %v936, %v934
        %v1099 = vsub.f32 %v937, %v935
        %v1100 = vsub.f32 %v938, %v936
        %v1101 = vsub.f32 %v939, %v937
        %v1102 = vmul.f32 %v1090, %v925
        %v1103 = vmul.f32 %v1091, %v925
        %v1104 = vmul.f32 %v1092, %v925
        %v1105 = vmul.f32 %v1093, %v925
        %v1106 = vmul.f32 %v1094, %v925
        %v1107 = vmul.f32 %v1095, %v925
        %v1108 = vmul.f32 %v1096, %v925
        %v1109 = vmul.f32 %v1097, %v925
        %v1110 = vmul.f32 %v1098, %v925
        %v1111 = vmul.f32 %v1099, %v925
        %v1112 = vmul.f32 %v1100, %v925
        %v1113 = vmul.f32 %v1101, %v925
        %v1114 = vadd.f32 %v1078, %v1102
        %v1115 = vadd.f32 %v1079, %v1103
        %v1116 = vadd.f32 %v1080, %v1104
        %v1117 = vadd.f32 %v1081, %v1105
        %v1118 = vadd.f32 %v1082, %v1106
        %v1119 = vadd.f32 %v1083, %v1107
        %v1120 = vadd.f32 %v1084, %v1108
        %v1121 = vadd.f32 %v1085, %v1109
        %v1122 = vadd.f32 %v1086, %v1110
        %v1123 = vadd.f32 %v1087, %v1111
        %v1124 = vadd.f32 %v1088, %v1112
        %v1125 = vadd.f32 %v1089, %v1113
        %v1126 = vsub.f32 %v1114, %v326
        %v1127 = vsub.f32 %v1115, %v327
        %v1128 = vsub.f32 %v1116, %v328
        %v1129 = vsub.f32 %v1117, %v329
        %v1130 = vsub.f32 %v1118, %v330
        %v1131 = vsub.f32 %v1119, %v331
        %v1132 = vsub.f32 %v1120, %v332
        %v1133 = vsub.f32 %v1121, %v333
        %v1134 = vsub.f32 %v1122, %v334
        %v1135 = vsub.f32 %v1123, %v335
        %v1136 = vsub.f32 %v1124, %v336
        %v1137 = vsub.f32 %v1125, %v337
        %v1138 = vmul.f32 %v276, %v1126
        %v1139 = vmul.f32 %v277, %v1127
        %v1140 = vmul.f32 %v278, %v1128
        %v1141 = vmul.f32 %v279, %v1129
        %v1142 = vmul.f32 %v280, %v1130
        %v1143 = vmul.f32 %v281, %v1131
        %v1144 = vmul.f32 %v282, %v1132
        %v1145 = vmul.f32 %v283, %v1133
        %v1146 = vmul.f32 %v284, %v1134
        %v1147 = vmul.f32 %v285, %v1135
        %v1148 = vmul.f32 %v286, %v1136
        %v1149 = vmul.f32 %v287, %v1137
        %v1150 = vmul.f32 %v1138, %v1126
        %v1151 = vmul.f32 %v1139, %v1127
        %v1152 = vmul.f32 %v1140, %v1128
        %v1153 = vmul.f32 %v1141, %v1129
        %v1154 = vmul.f32 %v1142, %v1130
        %v1155 = vmul.f32 %v1143, %v1131
        %v1156 = vmul.f32 %v1144, %v1132
        %v1157 = vmul.f32 %v1145, %v1133
        %v1158 = vmul.f32 %v1146, %v1134
        %v1159 = vmul.f32 %v1147, %v1135
        %v1160 = vmul.f32 %v1148, %v1136
        %v1161 = vmul.f32 %v1149, %v1137
        %v1174 = vrot.slane %v1150, 1
        %v1175 = vrot.slane %v1151, 1
        %v1176 = vsel %vm648, %v1174, %v1175
        %v1177 = vrot.slane %v1152, 1
        %v1178 = vrot.slane %v1153, 1
        %v1179 = vsel %vm648, %v1177, %v1178
        %v1180 = vrot.slane %v1154, 1
        %v1181 = vrot.slane %v1155, 1
        %v1182 = vsel %vm648, %v1180, %v1181
        %v1183 = vrot.slane %v1156, 1
        %v1184 = vrot.slane %v1157, 1
        %v1185 = vsel %vm648, %v1183, %v1184
        %v1186 = vrot.slane %v1158, 1
        %v1187 = vrot.slane %v1159, 1
        %v1188 = vsel %vm648, %v1186, %v1187
        %v1189 = vrot.slane %v1160, 1
        %v1190 = vrot.slane %v1161, 1
        %v1191 = vsel %vm648, %v1189, %v1190
        %1192 = vrot.lane.b32.xlu0 %v1176, 127
        %v1193 = vpop.permute.xlu0 %1192
        %1194 = vrot.lane.b32.xlu0 %v1175, 127
        %v1195 = vpop.permute.xlu0 %1194
        %1196 = vrot.lane.b32.xlu0 %v1179, 127
        %v1197 = vpop.permute.xlu0 %1196
        %1198 = vrot.lane.b32.xlu0 %v1178, 127
        %v1199 = vpop.permute.xlu0 %1198
        %1200 = vrot.lane.b32.xlu0 %v1182, 127
        %v1201 = vpop.permute.xlu0 %1200
        %1202 = vrot.lane.b32.xlu0 %v1181, 127
        %v1203 = vpop.permute.xlu0 %1202
        %1204 = vrot.lane.b32.xlu0 %v1185, 127
        %v1205 = vpop.permute.xlu0 %1204
        %1206 = vrot.lane.b32.xlu0 %v1184, 127
        %v1207 = vpop.permute.xlu0 %1206
        %1208 = vrot.lane.b32.xlu0 %v1188, 127
        %v1209 = vpop.permute.xlu0 %1208
        %1210 = vrot.lane.b32.xlu0 %v1187, 127
        %v1211 = vpop.permute.xlu0 %1210
        %1212 = vrot.lane.b32.xlu0 %v1191, 127
        %v1213 = vpop.permute.xlu0 %1212
        %1214 = vrot.lane.b32.xlu0 %v1190, 127
        %v1215 = vpop.permute.xlu0 %1214
        %vm1228 = vcmask 1031168
        %v1229 = vsel %vm1228, %v1193, 0.0
        %vm1230 = vcmask 1029120
        %v1231 = vsel %vm1230, %v1195, 0.0
        %v1232 = vadd.f32 %v1229, %v1231
        %v1233 = vsel %vm1228, %v1197, 0.0
        %v1234 = vadd.f32 %v1232, %v1233
        %v1235 = vsel %vm1230, %v1199, 0.0
        %v1236 = vadd.f32 %v1234, %v1235
        %v1237 = vsel %vm1228, %v1201, 0.0
        %v1238 = vadd.f32 %v1236, %v1237
        %v1239 = vsel %vm1230, %v1203, 0.0
        %v1240 = vadd.f32 %v1238, %v1239
        %v1241 = vsel %vm1228, %v1205, 0.0
        %v1242 = vadd.f32 %v1240, %v1241
        %v1243 = vsel %vm1230, %v1207, 0.0
        %v1244 = vadd.f32 %v1242, %v1243
        %v1245 = vsel %vm1228, %v1209, 0.0
        %v1246 = vadd.f32 %v1244, %v1245
        %v1247 = vsel %vm1230, %v1211, 0.0
        %v1248 = vadd.f32 %v1246, %v1247
        %v1249 = vsel %vm1228, %v1213, 0.0
        %v1250 = vadd.f32 %v1248, %v1249
        %v1251 = vsel %vm1230, %v1215, 0.0
        %v1252 = vadd.f32 %v1250, %v1251
        %1253 = vadd.xlane.f32.xlu0 %v1252
        %v1254 = vpop.xlane.xlu0 %1253
        %v1255 = vrot.slane %v1254, 4
        %v1256 = vadd.f32 %v1254, %v1255
        %v1257 = vrot.slane %v1256, 2
        %v1258 = vadd.f32 %v1256, %v1257
        %v1259 = vrot.slane %v1258, 1
        %v1260 = vadd.f32 %v1258, %v1259
        %s1261 = vtos %v1260
        %v1262 = vmul.f32 %v274, %v324
        %v1263 = vmul.f32 %v275, %v325
        %v1264 = vmul.f32 %v276, %v326
        %v1265 = vmul.f32 %v277, %v327
        %v1266 = vmul.f32 %v278, %v328
        %v1267 = vmul.f32 %v279, %v329
        %v1268 = vmul.f32 %v280, %v330
        %v1269 = vmul.f32 %v281, %v331
        %v1270 = vmul.f32 %v282, %v332
        %v1271 = vmul.f32 %v283, %v333
        %v1272 = vmul.f32 %v284, %v334
        %v1273 = vmul.f32 %v285, %v335
        %v1274 = vmul.f32 %v286, %v336
        %v1275 = vmul.f32 %v287, %v337
        %v1276 = vmul.f32 %v288, %v338
        %v1277 = vmul.f32 %v289, %v339
        %v1278 = vmul.f32 %v1262, %v324
        %v1279 = vmul.f32 %v1263, %v325
        %v1280 = vmul.f32 %v1264, %v326
        %v1281 = vmul.f32 %v1265, %v327
        %v1282 = vmul.f32 %v1266, %v328
        %v1283 = vmul.f32 %v1267, %v329
        %v1284 = vmul.f32 %v1268, %v330
        %v1285 = vmul.f32 %v1269, %v331
        %v1286 = vmul.f32 %v1270, %v332
        %v1287 = vmul.f32 %v1271, %v333
        %v1288 = vmul.f32 %v1272, %v334
        %v1289 = vmul.f32 %v1273, %v335
        %v1290 = vmul.f32 %v1274, %v336
        %v1291 = vmul.f32 %v1275, %v337
        %v1292 = vmul.f32 %v1276, %v338
        %v1293 = vmul.f32 %v1277, %v339
        %v1294 = vlaneseq
        %v1295 = vshrl.u32 %v1294, 7
        %v1296 = vadd.s32 %v1295, 8
        %v1297 = vlaneseq
        %v1298 = vand.u32 %v1297, 127
        %vm1299 = vcmp.gt.s32.totalorder %v1295, 0
        %vm1300 = vcmp.gt.s32.totalorder %v1296, 0
        %vm1301 = vcmp.lt.s32.totalorder %v1295, 15
        %vm1302 = vcmp.lt.s32.totalorder %v1296, 15
        %vm1303 = vmand %vm1299, %vm1301
        %vm1304 = vmand %vm1300, %vm1302
        %vm1305 = vcmp.gt.s32.totalorder %v1298, 0
        %vm1306 = vmand %vm1303, %vm1305
        %vm1307 = vmand %vm1304, %vm1305
        %vm1308 = vcmp.lt.s32.totalorder %v1298, 127
        %vm1309 = vmand %vm1306, %vm1308
        %vm1310 = vmand %vm1307, %vm1308
        %v1311 = vsel %vm1309, 1, 0
        %v1312 = vsel %vm1310, 1, 0
        %v1313 = vcvt.s32.f32 %v1311
        %v1314 = vcvt.s32.f32 %v1312
        %v1315 = vsub.f32 1.0, %v1313
        %v1316 = vsub.f32 1.0, %v1314
        %v1317 = vadd.f32 %v1278, %v1279
        %1318 = vadd.xlane.f32.xlu0 %v1317
        %v1319 = vpop.xlane.xlu0 %1318
        %v1320 = vrot.slane %v1319, 4
        %v1321 = vadd.f32 %v1319, %v1320
        %v1322 = vrot.slane %v1321, 2
        %v1323 = vadd.f32 %v1321, %v1322
        %v1324 = vrot.slane %v1323, 1
        %v1325 = vadd.f32 %v1323, %v1324
        %s1326 = vtos %v1325
        %v1327 = vadd.f32 %v1292, %v1293
        %1328 = vadd.xlane.f32.xlu0 %v1327
        %v1329 = vpop.xlane.xlu0 %1328
        %v1330 = vrot.slane %v1329, 4
        %v1331 = vadd.f32 %v1329, %v1330
        %v1332 = vrot.slane %v1331, 2
        %v1333 = vadd.f32 %v1331, %v1332
        %v1334 = vrot.slane %v1333, 1
        %v1335 = vadd.f32 %v1333, %v1334
        %s1336 = vtos %v1335
        %s1337 = sadd.f32 %s1326, %s1336
        %s1338 = sadd.f32 %s1261, %s1337
        %v1339 = vmul.f32 %v1280, %v1315
        %v1340 = vmul.f32 %v1281, %v1316
        %v1341 = vmul.f32 %v1282, %v1315
        %v1342 = vmul.f32 %v1283, %v1316
        %v1343 = vmul.f32 %v1284, %v1315
        %v1344 = vmul.f32 %v1285, %v1316
        %v1345 = vmul.f32 %v1286, %v1315
        %v1346 = vmul.f32 %v1287, %v1316
        %v1347 = vmul.f32 %v1288, %v1315
        %v1348 = vmul.f32 %v1289, %v1316
        %v1349 = vmul.f32 %v1290, %v1315
        %v1350 = vmul.f32 %v1291, %v1316
        %v1351 = vadd.f32 %v1339, %v1340
        %v1352 = vadd.f32 %v1351, %v1341
        %v1353 = vadd.f32 %v1352, %v1342
        %v1354 = vadd.f32 %v1353, %v1343
        %v1355 = vadd.f32 %v1354, %v1344
        %v1356 = vadd.f32 %v1355, %v1345
        %v1357 = vadd.f32 %v1356, %v1346
        %v1358 = vadd.f32 %v1357, %v1347
        %v1359 = vadd.f32 %v1358, %v1348
        %v1360 = vadd.f32 %v1359, %v1349
        %v1361 = vadd.f32 %v1360, %v1350
        %1362 = vadd.xlane.f32.xlu0 %v1361
        %v1363 = vpop.xlane.xlu0 %1362
        %v1364 = vrot.slane %v1363, 4
        %v1365 = vadd.f32 %v1363, %v1364
        %v1366 = vrot.slane %v1365, 2
        %v1367 = vadd.f32 %v1365, %v1366
        %v1368 = vrot.slane %v1367, 1
        %v1369 = vadd.f32 %v1367, %v1368
        %s1370 = vtos %v1369
        %s1371 = sadd.f32 %s1338, %s1370
        %v1372 = vstv %s1371
        %1373 = vst [vmem:[%s267] sm:$0x1] %v1372
        %p1374 = scmp.lt.s32.totalorder %s22, 1
        %s1375 = scalar_select %p1374, %s22, 1
        %s1376 = scalar_lea.vmem %s4, %s1375
        // Predicated region
        $region49: #{laplacian_loss_interface.1} parent=35 // pred_check
          %p1377 = pneg %p134
        $region50: #{laplacian_loss_interface.1} parent=35 // pred_check_branch
          %1379 = sbr.rel (%p1377) target = $region52
        $region51: #{laplacian_loss_interface.1} parent=35 // pred_region
          _
        $region52: #{laplacian_loss_interface.1} parent=35 // pred_fallthru
          _
      $region36: #{laplacian_loss_interface.1} parent=5 // pred_fallthru
        _
      %p1380 = scmp.le.s32.totalorder 2, %s17
      // Predicated region
      $region53: #{laplacian_loss_interface.1} parent=5 // pred_check
        %p1381 = pneg %p1380
      $region54: #{laplacian_loss_interface.1} parent=5 // pred_check_branch
        %1383 = sbr.rel (%p1381) target = $region56
      $region55: #{laplacian_loss_interface.1} parent=5 // pred_region
        %s1384 = ssub.s32 %s17, 2
        // Predicated region
        $region57: #{laplacian_loss_interface.1} parent=55 // pred_check
          %p1385 = pneg %p140
        $region58: #{laplacian_loss_interface.1} parent=55 // pred_check_branch
          %1387 = sbr.rel (%p1385) target = $region60
        $region59: #{laplacian_loss_interface.1} parent=55 // pred_region
          %p1388 = scmp.lt.s32.totalorder %s23, 1
          %s1389 = scalar_select %p1388, %s23, 1
          %s1390 = scalar_lea.vmem %s4, %s1389
        $region60: #{laplacian_loss_interface.1} parent=55 // pred_fallthru
          _
      $region56: #{laplacian_loss_interface.1} parent=5 // pred_fallthru
        _
    $region6: #{laplacian_loss_interface.1} parent=1 // loop_footer
      %s21 = sadd.s32 1, %s17
    $region7: #{laplacian_loss_interface.1} parent=1 // loop_footer_branch
      %16 = sbr.rel target = $region3
    $region8: #{laplacian_loss_interface.1} parent=1 // loop_exit
      _
    %1391 = vsyncpa [#allocation3], 1
    %s1392 = scalar_lea.sflag [#allocation3], 1
    %1393 = vsyncpa %s1392, 1
    %1394 = vsyncpa [#allocation7], 1
    %s1395 = scalar_lea.sflag [#allocation7], 1
    %1396 = vsyncpa %s1395, 1
    %1397 = vsyncpa [#allocation4], 1
    %s1398 = scalar_lea.sflag [#allocation4], 1
    %1399 = vsyncpa %s1398, 1

</llo_original>
